<compile_context>
chip_gen: v5e
topology: v5e:2x2
jax: 0.10.0
libtpu: 0.0.40
codegen_flags: <defaults>
</compile_context>

<pallas_src>
import functools
import math

import jax
import jax.numpy as jnp
from jax.experimental import pallas as pl
from jax.experimental.pallas import tpu as pltpu


_NEG_BIG = -1.0e30  # masks padded vocab lanes (finite, avoids inf-inf NaNs)


def _round_up(x, m):
    return (x + m - 1) // m * m


def _cdiv(a, b):
    return -(-a // b)


def _vmem_budget_bytes():
    """~3/4 of physical VMEM (48 MiB on v7x, 96 MiB on v5e/v6e); safe fallback."""
    cap = None
    try:
        cap = int(getattr(pltpu.get_tpu_info(), "vmem_capacity_bytes", 0)) or None
    except Exception:
        cap = None
    if not cap:
        cap = 64 * 1024 * 1024  # conservative: v7x per-TC VMEM
    return (cap * 3) // 4


def _num_tensorcores():
    """Best-effort TensorCore count (v7x = 2); defaults to 1 (safe everywhere)."""
    try:
        info = pltpu.get_tpu_info()
        for name in ("num_cores", "core_count", "num_tensorcores",
                     "tensorcore_count", "cores_per_chip"):
            n = getattr(info, name, None)
            if isinstance(n, int) and 1 <= n <= 8:
                return n
    except Exception:
        pass
    try:
        kind = jax.devices()[0].device_kind.lower()
        if "v7" in kind or "tpu7" in kind:
            return 2
    except Exception:
        pass
    return 1


def _generator_kernel(x_ref, w_ref, b_ref, o_ref, slab_ref, m_ref, l_ref):
    # x_ref:   (TM, D)        compute dtype
    # w_ref:   (D, TV)        compute dtype
    # b_ref:   (n_vt, 1, TV)  f32 (full padded bias, resident)
    # o_ref:   (TM, TV)       out dtype
    # slab_ref:(n_vt, TM, TV) f32 unnormalized logits for the current row tile
    # m_ref/l_ref: (TM, 1)    f32 running max / sum-of-exp
    p = pl.program_id(1)   # 0 = matmul + online LSE into slab, 1 = normalize & store
    v = pl.program_id(2)   # vocab tile index

    @pl.when(jnp.logical_and(p == 0, v == 0))
    def _init():
        m_ref[...] = jnp.full_like(m_ref, -jnp.inf)
        l_ref[...] = jnp.zeros_like(l_ref)

    @pl.when(p == 0)
    def _accumulate():
        # Single MXU pass; f32 accumulation; bias add in f32.
        logits = jnp.dot(x_ref[...], w_ref[...],
                         preferred_element_type=jnp.float32)
        logits = logits + b_ref[v]
        m_prev = m_ref[...]
        m_new = jnp.maximum(m_prev, jnp.max(logits, axis=-1, keepdims=True))
        l_ref[...] = (l_ref[...] * jnp.exp(m_prev - m_new)
                      + jnp.sum(jnp.exp(logits - m_new), axis=-1, keepdims=True))
        m_ref[...] = m_new
        slab_ref[v] = logits

    @pl.when(p == 1)
    def _write():
        # LSE subtraction in f32 from the slab, then cast once to out dtype.
        lse = m_ref[...] + jnp.log(l_ref[...])
        o_ref[...] = (slab_ref[v] - lse).astype(o_ref.dtype)


def prepare_generator_weights(w, b, *, tv=1024, compute_dtype=jnp.bfloat16):
    """One-time cast + pad of the projection weights (hoist out of the hot path).

    w: (d_model, vocab) -- transpose of the PyTorch Linear weight.
    b: (vocab,)
    Returns (w_padded, b_padded, vocab, tv_eff) where w_padded is compute_dtype
    (d_model, v_pad), b_padded is f32 (1, v_pad) with -1e30 in padded lanes.
    """
    d_model, vocab = w.shape
    del d_model
    tv_eff = max(128, (min(int(tv), _round_up(vocab, 128)) // 128) * 128)
    v_pad = _round_up(vocab, tv_eff)
    w_p = w.astype(compute_dtype)
    b_p = b.astype(jnp.float32).reshape(1, vocab)
    if v_pad != vocab:
        w_p = jnp.pad(w_p, ((0, 0), (0, v_pad - vocab)))
        # Padded vocab lanes get a huge negative bias so they never contaminate
        # the running max / LSE (exp(-1e30 - m) == 0).
        b_p = jnp.pad(b_p, ((0, 0), (0, v_pad - vocab)), constant_values=_NEG_BIG)
    return w_p, b_p, vocab, tv_eff


@functools.partial(jax.jit, static_argnames=("vocab", "tv", "tm", "out_dtype"))
def generator_forward_prepared(x, w_p, b_p, *, vocab, tv, tm=512, out_dtype=None):
    """log_softmax(x @ w + b, axis=-1) using pre-cast/pre-padded weights.

    x: (batch, seq, d_model); w_p: (d_model, v_pad) compute dtype;
    b_p: (1, v_pad) f32.  Returns (batch, seq, vocab).
    """
    batch, seq, d_model = x.shape
    assert w_p.shape[0] == d_model
    v_pad = w_p.shape[1]
    assert tv % 128 == 0 and v_pad % tv == 0, "vocab tile must divide padded vocab"
    out_dtype = x.dtype if out_dtype is None else out_dtype
    compute_dtype = w_p.dtype

    n_vt = v_pad // tv
    elt_c = jnp.dtype(compute_dtype).itemsize
    elt_o = jnp.dtype(out_dtype).itemsize

    m = batch * seq
    m8 = _round_up(m, 8)

    budget = _vmem_budget_bytes()

    def est(tm_e):
        return (2 * tm_e * d_model * elt_c       # x blocks (double-buffered)
                + 2 * d_model * tv * elt_c       # W blocks
                + 2 * n_vt * 8 * tv * 4          # resident bias (sublane-padded)
                + 2 * tm_e * tv * elt_o          # output blocks
                + tm_e * v_pad * 4               # f32 logits slab (scratch, single)
                + 4 * tm_e * 4                   # m/l scratch
                + (2 << 20))                     # headroom

    # Row tile: requested cap, shrunk until the slab + buffers fit the budget.
    tm_cap = _round_up(max(8, min(int(tm), m8)), 8)
    while est(tm_cap) > budget and tm_cap > 8:
        tm_cap = max(8, ((tm_cap // 2) // 8) * 8)
    if est(tm_cap) > budget:
        # TODO(synk): for multi-million-entry vocabularies where even a TM=8 f32
        # slab exceeds VMEM, fall back to writing unnormalized logits plus a
        # per-row LSE output and fixing up (out - lse) in a JAX epilogue.
        raise ValueError("vocab too large for the in-VMEM logits slab; reduce tv")

    # Balance row tiles to minimize padded rows; keep both TCs busy when possible.
    n_row = _cdiv(m8, tm_cap)
    if n_row == 1:
        n_row = min(_num_tensorcores(), max(1, m8 // 8))
    tm_eff = _round_up(_cdiv(m8, n_row), 8)
    n_row = _cdiv(m8, tm_eff)
    m_pad = n_row * tm_eff

    x2d = x.reshape(m, d_model).astype(compute_dtype)
    if m_pad != m:
        x2d = jnp.pad(x2d, ((0, m_pad - m), (0, 0)))
    b3 = b_p.reshape(n_vt, 1, tv)  # tiny; per-tile bias rows, resident in VMEM

    cost = pl.CostEstimate(
        flops=int(2 * m_pad * d_model * v_pad),            # single matmul pass
        transcendentals=int(m_pad * v_pad),                # exp in the LSE pass
        bytes_accessed=int(n_row * d_model * v_pad * elt_c  # W streamed per row tile
                           + m_pad * d_model * elt_c
                           + v_pad * 4
                           + m_pad * v_pad * elt_o),
    )

    # W blocks follow the vocab sweep during phase 0 and stay pinned (no DMA)
    # during the normalize pass (phase 1).
    def w_index(i, p, v):
        del i
        return (0, jnp.where(p == 0, v, n_vt - 1))

    # Output block index is pinned to (i, 0) during phase 0 (never written, never
    # flushed); phase 1 visits (i, v) and fully writes each block.
    def o_index(i, p, v):
        return (i, v * p)

    vmem_limit = int(min(budget, max(est(tm_eff) + (8 << 20), 32 << 20)))

    out = pl.pallas_call(
        _generator_kernel,
        out_shape=jax.ShapeDtypeStruct((m_pad, v_pad), out_dtype),
        grid_spec=pltpu.PrefetchScalarGridSpec(
            num_scalar_prefetch=0,
            # (row tiles, phase {0: matmul+LSE, 1: normalize+store}, vocab tiles)
            grid=(n_row, 2, n_vt),
            in_specs=[
                pl.BlockSpec((tm_eff, d_model), lambda i, p, v: (i, 0)),
                pl.BlockSpec((d_model, tv), w_index),
                pl.BlockSpec((n_vt, 1, tv), lambda i, p, v: (0, 0, 0)),
            ],
            out_specs=pl.BlockSpec((tm_eff, tv), o_index),
            scratch_shapes=[
                pltpu.VMEM((n_vt, tm_eff, tv), jnp.float32),  # logits slab
                pltpu.VMEM((tm_eff, 1), jnp.float32),         # running max
                pltpu.VMEM((tm_eff, 1), jnp.float32),         # running sum of exp
            ],
        ),
        compiler_params=pltpu.CompilerParams(
            dimension_semantics=("parallel", "arbitrary", "arbitrary"),
            vmem_limit_bytes=vmem_limit,
        ),
        cost_estimate=cost,
    )(x2d, w_p, b3)

    return out[:m, :vocab].reshape(batch, seq, vocab)


def generator_forward(x, w, b, *, tm=512, tv=1024,
                      compute_dtype=jnp.bfloat16, out_dtype=None):
    """Convenience wrapper (per-call weight prep). Prefer prepare_* + *_prepared
    in a real model so W is cast/padded only once."""
    w_p, b_p, vocab, tv_eff = prepare_generator_weights(
        w, b, tv=tv, compute_dtype=compute_dtype)
    return generator_forward_prepared(
        x, w_p, b_p, vocab=vocab, tv=tv_eff, tm=tm, out_dtype=out_dtype)


def _reference(x, w, b):
    logits = jnp.einsum("bsd,dv->bsv", x.astype(jnp.float32),
                        w.astype(jnp.float32)) + b.astype(jnp.float32)
    return jax.nn.log_softmax(logits, axis=-1)


if __name__ == "__main__":
    # Small shapes consistent with the module: batch=2, seq=8, d_model=32, vocab=128.
    batch, seq, d_model, vocab = 2, 8, 32, 128

    key = jax.random.PRNGKey(0)
    kx, kw, kb = jax.random.split(key, 3)

    x = jax.random.normal(kx, (batch, seq, d_model), dtype=jnp.float32)
    bound = 1.0 / (d_model ** 0.5)
    w = jax.random.uniform(kw, (d_model, vocab), jnp.float32, -bound, bound)
    b = jax.random.uniform(kb, (vocab,), jnp.float32, -bound, bound)

    ref = _reference(x, w, b)

    # Fast path: bf16 weights pre-cast/padded ONCE (hoisted out of the call),
    # f32 accumulation & softmax math inside the kernel.
    w_bf16, b_pad, voc, tv_eff = prepare_generator_weights(
        w, b, tv=1024, compute_dtype=jnp.bfloat16)
    out = jax.block_until_ready(
        generator_forward_prepared(x, w_bf16, b_pad, vocab=voc, tv=tv_eff))
    assert out.shape == (batch, seq, vocab)
    assert jnp.allclose(out, ref, atol=3e-2, rtol=3e-2), "bf16-path mismatch vs reference"

    # Exact-precision path (f32 MXU inputs) -> tight tolerance.
    out_f32 = jax.block_until_ready(
        generator_forward(x, w, b, compute_dtype=jnp.float32))
    assert jnp.allclose(out_f32, ref, atol=1e-5, rtol=1e-5), "f32-path mismatch vs reference"

    # Vocab-tiled + padded-vocab path: exercises the online LSE across vocab
    # tiles, the slab normalize pass, and masking of padded lanes
    # (vocab=200 -> padded to 256, tv=128 -> 2 vocab tiles).
    vocab2 = 200
    kw2, kb2 = jax.random.split(kb)
    w2 = jax.random.uniform(kw2, (d_model, vocab2), jnp.float32, -bound, bound)
    b2 = jax.random.uniform(kb2, (vocab2,), jnp.float32, -bound, bound)
    out2 = jax.block_until_ready(
        generator_forward(x, w2, b2, tv=128, compute_dtype=jnp.float32))
    ref2 = _reference(x, w2, b2)
    assert out2.shape == (batch, seq, vocab2)
    assert jnp.allclose(out2, ref2, atol=1e-5, rtol=1e-5), "tiled-vocab mismatch vs reference"

    print("KERNEL_OK")
</pallas_src>

<mosaic_0001>
module attributes {stable_mosaic.version = 11 : i64} {
  func.func @_generator_kernel(%arg0: i32, %arg1: i32, %arg2: i32, %arg3: memref<16x32xbf16, #tpu.memory_space<vmem>>, %arg4: memref<32x128xbf16, #tpu.memory_space<vmem>>, %arg5: memref<1x1x128xf32, #tpu.memory_space<vmem>>, %arg6: memref<16x128xf32, #tpu.memory_space<vmem>>, %arg7: memref<1x16x128xf32, #tpu.memory_space<vmem>>, %arg8: memref<16x1xf32, #tpu.memory_space<vmem>>, %arg9: memref<16x1xf32, #tpu.memory_space<vmem>>) attributes {dimension_semantics = [#tpu.dimension_semantics<parallel>, #tpu.dimension_semantics<arbitrary>, #tpu.dimension_semantics<arbitrary>], iteration_bounds = array<i64: 1, 2, 1>, scalar_prefetch = 0 : i64, scratch_operands = 3 : i64, tpu.core_type = #tpu.core_type<tc>, window_params = [{transform_indices = @transform_0, window_bounds = array<i64: 16, 32>}, {transform_indices = @transform_1, window_bounds = array<i64: 32, 128>}, {pipeline_mode = #tpu.pipeline_mode<synchronous>, transform_indices = @transform_2, window_bounds = array<i64: 1, 1, 128>}, {transform_indices = @transform_3, window_bounds = array<i64: 16, 128>}]} {
    %c0_i32 = arith.constant 0 : i32
    %0 = arith.cmpi eq, %arg1, %c0_i32 : i32
    %c0_i32_0 = arith.constant 0 : i32
    %1 = arith.cmpi eq, %arg2, %c0_i32_0 : i32
    %2 = arith.andi %0, %1 : i1
    %3 = arith.extui %2 : i1 to i32
    %c0_i32_1 = arith.constant 0 : i32
    %4 = arith.cmpi ne, %3, %c0_i32_1 : i32
    scf.if %4 {
      %cst = arith.constant 0xFF800000 : f32
      %11 = vector.broadcast %cst : f32 to vector<16x1xf32>
      %c0 = arith.constant 0 : index
      %c0_5 = arith.constant 0 : index
      %12 = vector.load %arg8[%c0, %c0_5] : memref<16x1xf32, #tpu.memory_space<vmem>>, vector<16x1xf32>
      tpu.vector_store %arg8[%c0, %c0_5], %11 {strides = array<i32>} : memref<16x1xf32, #tpu.memory_space<vmem>>, vector<16x1xf32>,
      %cst_6 = arith.constant 0.000000e+00 : f32
      %13 = vector.broadcast %cst_6 : f32 to vector<16x1xf32>
      %c0_7 = arith.constant 0 : index
      %c0_8 = arith.constant 0 : index
      %14 = vector.load %arg9[%c0_7, %c0_8] : memref<16x1xf32, #tpu.memory_space<vmem>>, vector<16x1xf32>
      tpu.vector_store %arg9[%c0_7, %c0_8], %13 {strides = array<i32>} : memref<16x1xf32, #tpu.memory_space<vmem>>, vector<16x1xf32>,
    } else {
    }
    %c0_i32_2 = arith.constant 0 : i32
    %5 = arith.cmpi eq, %arg1, %c0_i32_2 : i32
    %6 = arith.extui %5 : i1 to i32
    %c0_i32_3 = arith.constant 0 : i32
    %7 = arith.cmpi ne, %6, %c0_i32_3 : i32
    scf.if %7 {
      %c0 = arith.constant 0 : index
      %c0_5 = arith.constant 0 : index
      %11 = vector.load %arg3[%c0, %c0_5] : memref<16x32xbf16, #tpu.memory_space<vmem>>, vector<16x32xbf16>
      %c0_6 = arith.constant 0 : index
      %c0_7 = arith.constant 0 : index
      %12 = vector.load %arg4[%c0_6, %c0_7] : memref<32x128xbf16, #tpu.memory_space<vmem>>, vector<32x128xbf16>
      %cst = arith.constant dense<0.000000e+00> : vector<16x128xf32>
      %13 = tpu.matmul %11, %12, %cst {dimension_numbers = #tpu.dot_dimension_numbers<[1], [0], [0], [1], [0, 0, 1, 1], [], []>} : vector<16x32xbf16>, vector<32x128xbf16>, vector<16x128xf32> -> vector<16x128xf32>
      %14 = arith.index_cast %arg2 : i32 to index
      %c0_8 = arith.constant 0 : index
      %c0_9 = arith.constant 0 : index
      %15 = vector.load %arg5[%14, %c0_8, %c0_9] : memref<1x1x128xf32, #tpu.memory_space<vmem>>, vector<1x1x128xf32>
      %16 = vector.shape_cast %15 : vector<1x1x128xf32> to vector<1x128xf32>
      %17 = vector.broadcast %16 : vector<1x128xf32> to vector<16x128xf32>
      %18 = arith.addf %13, %17 : vector<16x128xf32>
      %c0_10 = arith.constant 0 : index
      %c0_11 = arith.constant 0 : index
      %19 = vector.load %arg8[%c0_10, %c0_11] : memref<16x1xf32, #tpu.memory_space<vmem>>, vector<16x1xf32>
      %cst_12 = arith.constant dense<0xFF800000> : vector<16xf32>
      %20 = vector.multi_reduction <maximumf>, %18, %cst_12 [1] : vector<16x128xf32> to vector<16xf32>
      %21 = vector.shape_cast %20 : vector<16xf32> to vector<16x1xf32>
      %22 = arith.maximumf %19, %21 : vector<16x1xf32>
      %c0_13 = arith.constant 0 : index
      %c0_14 = arith.constant 0 : index
      %23 = vector.load %arg9[%c0_13, %c0_14] : memref<16x1xf32, #tpu.memory_space<vmem>>, vector<16x1xf32>
      %24 = arith.subf %19, %22 : vector<16x1xf32>
      %25 = math.exp %24 : vector<16x1xf32>
      %26 = arith.mulf %23, %25 : vector<16x1xf32>
      %27 = vector.broadcast %22 : vector<16x1xf32> to vector<16x128xf32>
      %28 = arith.subf %18, %27 : vector<16x128xf32>
      %29 = math.exp %28 : vector<16x128xf32>
      %cst_15 = arith.constant dense<0.000000e+00> : vector<16xf32>
      %30 = vector.multi_reduction <add>, %29, %cst_15 [1] : vector<16x128xf32> to vector<16xf32>
      %31 = vector.shape_cast %30 : vector<16xf32> to vector<16x1xf32>
      %32 = arith.addf %26, %31 : vector<16x1xf32>
      %c0_16 = arith.constant 0 : index
      %c0_17 = arith.constant 0 : index
      %33 = vector.load %arg9[%c0_16, %c0_17] : memref<16x1xf32, #tpu.memory_space<vmem>>, vector<16x1xf32>
      tpu.vector_store %arg9[%c0_16, %c0_17], %32 {strides = array<i32>} : memref<16x1xf32, #tpu.memory_space<vmem>>, vector<16x1xf32>,
      %c0_18 = arith.constant 0 : index
      %c0_19 = arith.constant 0 : index
      %34 = vector.load %arg8[%c0_18, %c0_19] : memref<16x1xf32, #tpu.memory_space<vmem>>, vector<16x1xf32>
      tpu.vector_store %arg8[%c0_18, %c0_19], %22 {strides = array<i32>} : memref<16x1xf32, #tpu.memory_space<vmem>>, vector<16x1xf32>,
      %35 = arith.index_cast %arg2 : i32 to index
      %c0_20 = arith.constant 0 : index
      %c0_21 = arith.constant 0 : index
      %36 = vector.load %arg7[%35, %c0_20, %c0_21] : memref<1x16x128xf32, #tpu.memory_space<vmem>>, vector<1x16x128xf32>
      %37 = vector.shape_cast %36 : vector<1x16x128xf32> to vector<16x128xf32>
      %38 = vector.shape_cast %18 : vector<16x128xf32> to vector<1x16x128xf32>
      tpu.vector_store %arg7[%35, %c0_20, %c0_21], %38 {strides = array<i32>} : memref<1x16x128xf32, #tpu.memory_space<vmem>>, vector<1x16x128xf32>,
    } else {
    }
    %c1_i32 = arith.constant 1 : i32
    %8 = arith.cmpi eq, %arg1, %c1_i32 : i32
    %9 = arith.extui %8 : i1 to i32
    %c0_i32_4 = arith.constant 0 : i32
    %10 = arith.cmpi ne, %9, %c0_i32_4 : i32
    scf.if %10 {
      %c0 = arith.constant 0 : index
      %c0_5 = arith.constant 0 : index
      %11 = vector.load %arg8[%c0, %c0_5] : memref<16x1xf32, #tpu.memory_space<vmem>>, vector<16x1xf32>
      %c0_6 = arith.constant 0 : index
      %c0_7 = arith.constant 0 : index
      %12 = vector.load %arg9[%c0_6, %c0_7] : memref<16x1xf32, #tpu.memory_space<vmem>>, vector<16x1xf32>
      %13 = math.log %12 : vector<16x1xf32>
      %14 = arith.addf %11, %13 : vector<16x1xf32>
      %15 = arith.index_cast %arg2 : i32 to index
      %c0_8 = arith.constant 0 : index
      %c0_9 = arith.constant 0 : index
      %16 = vector.load %arg7[%15, %c0_8, %c0_9] : memref<1x16x128xf32, #tpu.memory_space<vmem>>, vector<1x16x128xf32>
      %17 = vector.shape_cast %16 : vector<1x16x128xf32> to vector<16x128xf32>
      %18 = vector.broadcast %14 : vector<16x1xf32> to vector<16x128xf32>
      %19 = arith.subf %17, %18 : vector<16x128xf32>
      %c0_10 = arith.constant 0 : index
      %c0_11 = arith.constant 0 : index
      %20 = vector.load %arg6[%c0_10, %c0_11] : memref<16x128xf32, #tpu.memory_space<vmem>>, vector<16x128xf32>
      tpu.vector_store %arg6[%c0_10, %c0_11], %19 {strides = array<i32>} : memref<16x128xf32, #tpu.memory_space<vmem>>, vector<16x128xf32>,
    } else {
    }
    return
  }
  func.func @transform_0(%arg0: i32, %arg1: i32, %arg2: i32) -> (i32, i32) {
    %c0_i32 = arith.constant 0 : i32
    %c0_i32_0 = arith.constant 0 : i32
    return %arg0, %c0_i32 : i32, i32
  }
  func.func @transform_1(%arg0: i32, %arg1: i32, %arg2: i32) -> (i32, i32) {
    %c0_i32 = arith.constant 0 : i32
    %0 = arith.cmpi eq, %arg1, %c0_i32 : i32
    %c0_i32_0 = arith.constant 0 : i32
    %1 = arith.select %0, %arg2, %c0_i32_0 : i32
    %c0_i32_1 = arith.constant 0 : i32
    %c0_i32_2 = arith.constant 0 : i32
    return %c0_i32_1, %1 : i32, i32
  }
  func.func @transform_2(%arg0: i32, %arg1: i32, %arg2: i32) -> (i32, i32, i32) {
    %c0_i32 = arith.constant 0 : i32
    %c0_i32_0 = arith.constant 0 : i32
    %c0_i32_1 = arith.constant 0 : i32
    %c0_i32_2 = arith.constant 0 : i32
    return %c0_i32, %c0_i32_0, %c0_i32_1 : i32, i32, i32
  }
  func.func @transform_3(%arg0: i32, %arg1: i32, %arg2: i32) -> (i32, i32) {
    %0 = arith.muli %arg2, %arg1 : i32
    %c0_i32 = arith.constant 0 : i32
    return %arg0, %0 : i32, i32
  }
}

</mosaic_0001>

<llo_original>
// kernel: generator_forward_prepared.1
$region0: #{generator_forward_prepared.1}
  #allocation0 [shape = 'u32[]', space=smem, size = 0x4, offset = 0x4, fixed_abs, tag = 'smem constant byte address 0x4 - core index']
  #allocation1 [shape = 'u32[72,128]{1,0:T(1,128)}', space=vmem, size = 0x9000, scoped, tag = 'internal scratch']
  #allocation2 [shape = 'f32[1,16,128]{2,1,0:T(8,128)}', space=vmem, size = 0x2000, scoped, tag = 'scratch operand']
  #allocation3 [shape = 'f32[16,1]{1,0:T(8,128)}', space=vmem, size = 0x2000, scoped, tag = 'scratch operand']
  #allocation4 [shape = 'f32[16,1]{1,0:T(8,128)}', space=vmem, size = 0x2000, scoped, tag = 'scratch operand']
  %s0 = inlined_call_operand.vmem [shape: bf16[16,32], index: 0, kind: input, shape index: {}]
  %s1 = inlined_call_operand.vmem [shape: bf16[32,128], index: 1, kind: input, shape index: {}]
  %s2 = inlined_call_operand.vmem [shape: f32[1,1,128], index: 2, kind: input, shape index: {}]
  %s3 = inlined_call_operand.hbm [shape: f32[16,128], index: 3, kind: output, shape index: {}]
  %s4 = sld [smem:[#allocation0]]
  $region57: #{generator_forward_prepared.1} parent=0
    _
  %s6 = ssub.s32 1, %s4
  %s7 = scalar_select 0, %s6, %s4
  $region1: #{generator_forward_prepared.1} parent=0
    #allocation5 [shape = 'u8[16384]{0}', space=vmem, size = 0x4000, scoped, tag = 'output window, operand 0']
    #allocation6 [shape = 's32[2]{0}', space=sflag, size = 0x8, scoped, tag = 'scoped memory for generator_forward_prepared.1']
    %8 = vsyncpa [#allocation6], 0
    %s9 = scalar_lea.sflag [#allocation6], 1
    %10 = vsyncpa %s9, 0
    loop: start=0, step=1, limit=4
    $region2: #{generator_forward_prepared.1} parent=1 // loop_pre_header
      _
    $region3: #{generator_forward_prepared.1} parent=1 // loop_header
      %s12 = sphi 0, %s16
      %p13 = scmp.ge.s32.totalorder %s12, 4
      %s19 = sphi 0, %s38
      %s20 = sphi 0, %s34
      %s21 = sphi 0, %s30
      %s22 = sphi 0, %s19
      %s23 = sphi 0, %s20
      %s24 = sphi 0, %s21
      %s25 = sphi 0, %s22
      %s26 = sphi 0, %s23
      %s27 = sphi 0, %s24
      %s41 = sphi 0, %s43
      %s44 = sphi 0, %s41
      %s45 = sphi 0, %s44
      %s61 = sphi 0, %s45
      %s71 = sphi 0, %s73
      %s74 = sphi 0, %s71
      %s75 = sphi 0, %s74
      %s91 = sphi 0, %s75
      %s95 = sphi 0, %s95
      %s97 = sphi 0, %s95
      %s98 = sphi 0, %s97
      %s112 = sphi 0, %s98
      %s122 = sphi 0, %s124
      %s125 = sphi 0, %s122
      %s126 = sphi 0, %s125
      %s142 = sphi 0, %s126
    $region4: #{generator_forward_prepared.1} parent=1 // loop_header_branch
      %15 = sbr.rel (%p13) target = $region8
    $region5: #{generator_forward_prepared.1} parent=1 // loop_body
      %s17 = ssub.s32 %s12, 1
      %s18 = ssub.s32 %s12, 2
      %s28 = sadd.s32 1, %s21
      %p29 = scmp.ge.s32.totalorder %s28, 1
      %s30 = scalar_select %p29, 0, %s28
      %s31 = sadd.s32 1, %s20
      %s32 = scalar_select %p29, %s31, %s20
      %p33 = scmp.ge.s32.totalorder %s32, 2
      %s34 = scalar_select %p33, 0, %s32
      %s35 = sadd.s32 1, %s19
      %s36 = scalar_select %p33, %s35, %s19
      %p37 = scmp.ge.s32.totalorder %s36, 1
      %s38 = scalar_select %p37, 0, %s36
      %s39 = ssub.s32 %s19, %s38
      %p40 = scmp.eq.s32.totalorder %s39, 0
      %s42 = sadd.s32 %s41, 1
      %s43 = scalar_select %p40, %s41, %s42
      %p46 = pneg %p40
      %p47 = scmp.eq.s32.totalorder %s12, 1
      %p48 = por %p46, %p47
      %p49 = scmp.ne.s32.totalorder %s41, %s44
      %p50 = scmp.eq.s32.totalorder %s12, 0
      %p51 = por %p49, %p50
      %p52 = scmp.ne.s32.totalorder %s41, %s44
      %p53 = scmp.eq.s32.totalorder %s17, 1
      %p54 = por %p52, %p53
      %p55 = scmp.ne.s32.totalorder %s44, %s45
      %p56 = scmp.eq.s32.totalorder %s17, 0
      %p57 = por %p55, %p56
      %p58 = scmp.ne.s32.totalorder %s44, %s45
      %p59 = scmp.eq.s32.totalorder %s18, 1
      %p60 = por %p58, %p59
      %p62 = scmp.ne.s32.totalorder %s45, %s61
      %p63 = scmp.eq.s32.totalorder %s18, 0
      %p64 = por %p62, %p63
      %p65 = scmp.eq.s32.totalorder %s20, 0
      %s66 = scalar_select %p65, %s21, 0
      %p67 = scmp.eq.s32.totalorder %s34, 0
      %s68 = scalar_select %p67, %s30, 0
      %s69 = ssub.s32 %s66, %s68
      %p70 = scmp.eq.s32.totalorder %s69, 0
      %s72 = sadd.s32 %s71, 1
      %s73 = scalar_select %p70, %s71, %s72
      %p76 = pneg %p70
      %p77 = scmp.eq.s32.totalorder %s12, 1
      %p78 = por %p76, %p77
      %p79 = scmp.ne.s32.totalorder %s71, %s74
      %p80 = scmp.eq.s32.totalorder %s12, 0
      %p81 = por %p79, %p80
      %p82 = scmp.ne.s32.totalorder %s71, %s74
      %p83 = scmp.eq.s32.totalorder %s17, 1
      %p84 = por %p82, %p83
      %p85 = scmp.ne.s32.totalorder %s74, %s75
      %p86 = scmp.eq.s32.totalorder %s17, 0
      %p87 = por %p85, %p86
      %p88 = scmp.ne.s32.totalorder %s74, %s75
      %p89 = scmp.eq.s32.totalorder %s18, 1
      %p90 = por %p88, %p89
      %p92 = scmp.ne.s32.totalorder %s75, %s91
      %p93 = scmp.eq.s32.totalorder %s18, 0
      %p94 = por %p92, %p93
      %s96 = sadd.s32 %s95, 1
      %p99 = scmp.eq.s32.totalorder %s12, 1
      %p100 = scmp.ne.s32.totalorder %s95, %s97
      %p101 = scmp.eq.s32.totalorder %s12, 0
      %p102 = por %p100, %p101
      %p103 = scmp.ne.s32.totalorder %s95, %s97
      %p104 = scmp.eq.s32.totalorder %s17, 1
      %p105 = por %p103, %p104
      %p106 = scmp.ne.s32.totalorder %s97, %s98
      %p107 = scmp.eq.s32.totalorder %s17, 0
      %p108 = por %p106, %p107
      %p109 = scmp.ne.s32.totalorder %s97, %s98
      %p110 = scmp.eq.s32.totalorder %s18, 1
      %p111 = por %p109, %p110
      %p113 = scmp.ne.s32.totalorder %s98, %s112
      %p114 = scmp.eq.s32.totalorder %s18, 0
      %p115 = por %p113, %p114
      %s116 = smul.u32 %s21, %s20
      %s117 = smul.u32 %s30, %s34
      %s118 = ssub.s32 %s19, %s38
      %s119 = ssub.s32 %s116, %s117
      %s120 = sor.u32 %s118, %s119
      %p121 = scmp.eq.s32.totalorder %s120, 0
      %s123 = sadd.s32 %s122, 1
      %s124 = scalar_select %p121, %s122, %s123
      %p127 = pneg %p121
      %p128 = scmp.eq.s32.totalorder %s12, 1
      %p129 = por %p127, %p128
      %p130 = scmp.ne.s32.totalorder %s122, %s125
      %p131 = scmp.eq.s32.totalorder %s12, 0
      %p132 = por %p130, %p131
      %p133 = scmp.ne.s32.totalorder %s122, %s125
      %p134 = scmp.eq.s32.totalorder %s17, 1
      %p135 = por %p133, %p134
      %p136 = scmp.ne.s32.totalorder %s125, %s126
      %p137 = scmp.eq.s32.totalorder %s17, 0
      %p138 = por %p136, %p137
      %p139 = scmp.ne.s32.totalorder %s125, %s126
      %p140 = scmp.eq.s32.totalorder %s18, 1
      %p141 = por %p139, %p140
      %p143 = scmp.ne.s32.totalorder %s126, %s142
      %p144 = scmp.eq.s32.totalorder %s18, 0
      %p145 = por %p143, %p144
      %p146 = scmp.le.s32.totalorder 1, %s12
      %p147 = scmp.lt.s32.totalorder %s12, 3
      %p148 = pnand %p146, %p147
      %p149 = pneg %p148
      // Predicated region
      $region9: #{generator_forward_prepared.1} parent=5 // pred_check
        _
      $region10: #{generator_forward_prepared.1} parent=5 // pred_check_branch
        %151 = sbr.rel (%p148) target = $region12
      $region11: #{generator_forward_prepared.1} parent=5 // pred_region
        %s152 = ssub.s32 %s12, 1
        // Predicated region
        $region13: #{generator_forward_prepared.1} parent=11 // pred_check
          %p153 = pneg %p57
        $region14: #{generator_forward_prepared.1} parent=11 // pred_check_branch
          %155 = sbr.rel (%p153) target = $region16
        $region15: #{generator_forward_prepared.1} parent=11 // pred_region
          %s156 = smul.u32 2, %s22
          %p157 = scmp.lt.s32.totalorder %s156, 1
          %s158 = scalar_select %p157, %s156, 1
          %s159 = smul.addr %s158, 4
          %s160 = scalar_lea.vmem %s0, %s159
          %s161 = smul.u32 2, %s22
        $region16: #{generator_forward_prepared.1} parent=11 // pred_fallthru
          _
        // Predicated region
        $region17: #{generator_forward_prepared.1} parent=11 // pred_check
          %p162 = pneg %p108
        $region18: #{generator_forward_prepared.1} parent=11 // pred_check_branch
          %164 = sbr.rel (%p162) target = $region20
        $region19: #{generator_forward_prepared.1} parent=11 // pred_region
          _
        $region20: #{generator_forward_prepared.1} parent=11 // pred_fallthru
          _
      $region12: #{generator_forward_prepared.1} parent=5 // pred_fallthru
        _
      %p165 = scmp.lt.s32.totalorder %s12, 2
      // Predicated region
      $region21: #{generator_forward_prepared.1} parent=5 // pred_check
        %p166 = pneg %p165
      $region22: #{generator_forward_prepared.1} parent=5 // pred_check_branch
        %168 = sbr.rel (%p166) target = $region24
      $region23: #{generator_forward_prepared.1} parent=5 // pred_region
        // Predicated region
        $region25: #{generator_forward_prepared.1} parent=23 // pred_check
          %p169 = pneg %p81
        $region26: #{generator_forward_prepared.1} parent=23 // pred_check_branch
          %171 = sbr.rel (%p169) target = $region28
        $region27: #{generator_forward_prepared.1} parent=23 // pred_region
          %p172 = scmp.eq.s32.totalorder %s20, 0
          %s173 = scalar_select %p172, %s21, 0
          %p174 = scmp.lt.s32.totalorder %s173, 0
          %s175 = scalar_select %p174, %s173, 0
          %s176 = smul.addr %s175, 4
          %s177 = scalar_lea.vmem %s1, %s176
          %p178 = scmp.eq.s32.totalorder %s20, 0
          %s179 = scalar_select %p178, %s21, 0
        $region28: #{generator_forward_prepared.1} parent=23 // pred_fallthru
          _
      $region24: #{generator_forward_prepared.1} parent=5 // pred_fallthru
        _
      %p180 = scmp.le.s32.totalorder 1, %s12
      %p181 = scmp.lt.s32.totalorder %s12, 3
      %p182 = pnand %p180, %p181
      %p183 = pneg %p182
      // Predicated region
      $region29: #{generator_forward_prepared.1} parent=5 // pred_check
        _
      $region30: #{generator_forward_prepared.1} parent=5 // pred_check_branch
        %185 = sbr.rel (%p182) target = $region32
      $region31: #{generator_forward_prepared.1} parent=5 // pred_region
        %s186 = ssub.s32 %s12, 1
        %s187 = smul.u32 2, %s22
        %p188 = scmp.lt.s32.totalorder %s187, 1
        %s189 = scalar_select %p188, %s187, 1
        %s190 = smul.addr %s189, 4
        %s191 = scalar_lea.vmem %s0, %s190
        %p192 = pneg %p57
        %p193 = pneg %p54
        %p194 = scmp.eq.s32.totalorder %s23, 0
        %s195 = scalar_select %p194, %s24, 0
        %p196 = scmp.lt.s32.totalorder %s195, 0
        %s197 = scalar_select %p196, %s195, 0
        %s198 = smul.addr %s197, 4
        %s199 = scalar_lea.vmem %s1, %s198
        %p200 = pneg %p87
        %p201 = pneg %p84
        %p202 = pneg %p108
        %p203 = pneg %p105
        %p204 = pneg %p138
        %p205 = pneg %p135
        %s206 = sand.u32 %s125, 1
        %s207 = scalar_lea.sflag [#allocation6], %s206
        %s208 = sand.u32 %s125, 1
        %s209 = smul.addr %s208, 16
        %s210 = scalar_lea.vmem [#allocation5], %s209
        %s211 = smul.u32 2, %s22
        %p212 = scmp.lt.s32.totalorder %s211, 1
        %s213 = scalar_select %p212, %s211, 1
        %s214 = smul.addr %s213, 4
        %s215 = scalar_lea.vmem %s0, %s214
        %s216 = smul.u32 2, %s22
        %p217 = scmp.eq.s32.totalorder %s23, 0
        %s218 = scalar_select %p217, %s24, 0
        %p219 = scmp.lt.s32.totalorder %s218, 0
        %s220 = scalar_select %p219, %s218, 0
        %s221 = smul.addr %s220, 4
        %s222 = scalar_lea.vmem %s1, %s221
        %p223 = scmp.eq.s32.totalorder %s23, 0
        %s224 = scalar_select %p223, %s24, 0
        %s225 = smul.u32 %s24, %s23
        %s226 = smul.u32 2, %s22
        %p228 = scmp.eq.s32.totalorder %s23, 0
        %p229 = scmp.eq.s32.totalorder %s24, 0
        %p230 = pnand %p228, %p229
        %p231 = pneg %p230
        // Predicated region
        $region33: #{generator_forward_prepared.1} parent=31 // pred_check
          _
        $region34: #{generator_forward_prepared.1} parent=31 // pred_check_branch
          %233 = sbr.rel (%p230) target = $region36
        $region35: #{generator_forward_prepared.1} parent=31 // pred_region
          %vm234 = vcmask 7168
          %235 = vst.msk [vmem:[#allocation3] sm:$0xff] %vm234, -inf
          %236 = vst.msk [vmem:[#allocation3 + $0x8] sm:$0xff] %vm234, -inf
          %237 = vst.msk [vmem:[#allocation4] sm:$0xff] %vm234, 0.0
          %238 = vst.msk [vmem:[#allocation4 + $0x8] sm:$0xff] %vm234, 0.0
        $region36: #{generator_forward_prepared.1} parent=31 // pred_fallthru
          _
        // Predicated region
        $region37: #{generator_forward_prepared.1} parent=31 // pred_check
          %p239 = pneg %p228
        $region38: #{generator_forward_prepared.1} parent=31 // pred_check_branch
          %241 = sbr.rel (%p239) target = $region40
        $region39: #{generator_forward_prepared.1} parent=31 // pred_region
          %v242 = vld [vmem:[%s215] sm:$0xf]
          %v243 = vld [vmem:[%s215 + $0x4] sm:$0xf]
          %v244 = vld [vmem:[%s222] sm:$0xf]
          %v245 = vld [vmem:[%s222 + $0x4] sm:$0xf]
          %v246 = vld [vmem:[%s222 + $0x8] sm:$0xf]
          %v247 = vld [vmem:[%s222 + $0xc] sm:$0xf]
          %s248 = scalar_lea.vmem %s2, %s24
          %v249 = vld [vmem:[%s248] sm:$0x1]
          %v251 = vperm.slane %v249, 0
          %v255 = vunpack.c.l.b16 %v242
          %v256 = vunpack.c.l.b16 %v243
          %v257 = vpack.c.b16 %v256, %v255
          %v262 = vunpack.c.l.b16 %v244
          %v263 = vunpack.c.l.b16 %v245
          %v264 = vunpack.c.l.b16 %v246
          %v265 = vunpack.c.l.b16 %v247
          %v266 = vpack.c.b16 %v263, %v262
          %v267 = vpack.c.b16 %v265, %v264
          %vm270 = vcmask 261120
          %v272 = vsel %vm270, %v257, 0
          %274 = vmatpush.bf16.msra.mxu0 0
          %275 = vmatpush.bf16.msra.mxu0 0
          %276 = vmatpush.bf16.msra.mxu0 0
          %277 = vmatpush.bf16.msra.mxu0 0
          %278 = vmatpush.bf16.msra.mxu0 0
          %279 = vmatpush.bf16.msra.mxu0 0
          %280 = vmatpush.bf16.msra.mxu0 %v267
          %281 = vmatpush.bf16.msra.mxu0 %v266
          %282 = vmatmul.bf16.gmra.mxu0 %v272
          %v283 = vpop.f32.mrf.mxu0
          %v284 = vadd.f32 %v251, %v283
          %v285 = vpop.f32.mrf.mxu0
          %v286 = vadd.f32 %v251, %v285
          %287 = vdwg.mxu0
          %v288 = vld [vmem:[#allocation3] sm:$0xff]
          %v289 = vld [vmem:[#allocation3 + $0x8] sm:$0xff]
          %290 = vmax.xlane.f32.xlu0 %v284
          %v291 = vpop.xlane.xlu0 %290
          %292 = vmax.xlane.f32.xlu0 %v286
          %v293 = vpop.xlane.xlu0 %292
          %v294 = vmax.f32 %v288, %v291
          %v295 = vmax.f32 %v289, %v293
          %v296 = vld [vmem:[#allocation4] sm:$0xff]
          %v297 = vld [vmem:[#allocation4 + $0x8] sm:$0xff]
          %v298 = vsub.f32 %v288, %v294
          %v299 = vsub.f32 %v289, %v295
          %v300 = vmul.f32 %v298, 1.442695
          %v301 = vpow.pop %v300
          %v302 = vmul.f32 %v299, 1.442695
          %v303 = vpow.pop %v302
          %v304 = vmul.f32 %v296, %v301
          %v305 = vmul.f32 %v297, %v303
          %307 = vset.pattern.permute.xlu0 0
          %308 = vperm.xlu0 %307, %v294
          %v309 = vpop.permute.xlu0 %308
          %312 = vset.pattern.permute.xlu0 0
          %313 = vperm.xlu0 %312, %v295
          %v314 = vpop.permute.xlu0 %313
          %v316 = vsub.f32 %v284, %v309
          %v317 = vsub.f32 %v286, %v314
          %v318 = vmul.f32 %v316, 1.442695
          %v319 = vpow.pop %v318
          %v320 = vmul.f32 %v317, 1.442695
          %v321 = vpow.pop %v320
          %322 = vadd.xlane.f32.xlu0 %v319
          %v323 = vpop.xlane.xlu0 %322
          %324 = vadd.xlane.f32.xlu0 %v321
          %v325 = vpop.xlane.xlu0 %324
          %v326 = vadd.f32 %v304, %v323
          %v327 = vadd.f32 %v305, %v325
          %vm328 = vcmask 7168
          %329 = vst.msk [vmem:[#allocation4] sm:$0xff] %vm328, %v326
          %330 = vst.msk [vmem:[#allocation4 + $0x8] sm:$0xff] %vm328, %v327
          %331 = vst.msk [vmem:[#allocation3] sm:$0xff] %vm328, %v294
          %332 = vst.msk [vmem:[#allocation3 + $0x8] sm:$0xff] %vm328, %v295
          %s333 = smul.u32 %s24, 16
          %s334 = scalar_lea.vmem [#allocation2], %s333
          %335 = vst [vmem:[%s334] sm:$0xff] %v284
          %336 = vst [vmem:[%s334 + $0x8] sm:$0xff] %v286
        $region40: #{generator_forward_prepared.1} parent=31 // pred_fallthru
          _
        %p337 = scmp.eq.s32.totalorder %s23, 1
        // Predicated region
        $region41: #{generator_forward_prepared.1} parent=31 // pred_check
          %p338 = pneg %p337
        $region42: #{generator_forward_prepared.1} parent=31 // pred_check_branch
          %340 = sbr.rel (%p338) target = $region44
        $region43: #{generator_forward_prepared.1} parent=31 // pred_region
          %v341 = vld [vmem:[#allocation3] sm:$0xff]
          %v342 = vld [vmem:[#allocation3 + $0x8] sm:$0xff]
          %v343 = vld [vmem:[#allocation4] sm:$0xff]
          %v344 = vld [vmem:[#allocation4 + $0x8] sm:$0xff]
          %v345 = vlog2.pop %v343
          %v346 = vmul.f32 %v345, 0.6931472
          %v347 = vlog2.pop %v344
          %v348 = vmul.f32 %v347, 0.6931472
          %v349 = vadd.f32 %v341, %v346
          %v350 = vadd.f32 %v342, %v348
          %s351 = smul.u32 %s24, 16
          %s352 = scalar_lea.vmem [#allocation2], %s351
          %v353 = vld [vmem:[%s352] sm:$0xff]
          %v354 = vld [vmem:[%s352 + $0x8] sm:$0xff]
          %356 = vset.pattern.permute.xlu0 0
          %357 = vperm.xlu0 %356, %v349
          %v358 = vpop.permute.xlu0 %357
          %361 = vset.pattern.permute.xlu0 0
          %362 = vperm.xlu0 %361, %v350
          %v363 = vpop.permute.xlu0 %362
          %v365 = vsub.f32 %v353, %v358
          %v366 = vsub.f32 %v354, %v363
          %367 = vst [vmem:[%s210] sm:$0xff] %v365
          %368 = vst [vmem:[%s210 + $0x8] sm:$0xff] %v366
        $region44: #{generator_forward_prepared.1} parent=31 // pred_fallthru
          _
        %s369 = sand.u32 %s125, 1
        %s370 = scalar_lea.sflag [#allocation6], %s369
        %s371 = sand.u32 %s125, 1
        %s372 = smul.addr %s371, 16
        %s373 = scalar_lea.vmem [#allocation5], %s372
        // Predicated region
        $region45: #{generator_forward_prepared.1} parent=31 // pred_check
          %p374 = pneg %p135
        $region46: #{generator_forward_prepared.1} parent=31 // pred_check_branch
          %376 = sbr.rel (%p374) target = $region48
        $region47: #{generator_forward_prepared.1} parent=31 // pred_region
          %s377 = smul.u32 %s24, %s23
          %s378 = smul.u32 2, %s22
          %380 = vsyncadd %s370, 0
          %s381 = sadd.s32 %s377, %s378
          %s382 = smul.addr %s381, 8
          %s383 = scalar_lea.hbm %s3, %s382
          %s384 = sshll.u32 %s373, 4
          %s385 = int_to_ptr.vmem [resolvable:$true] %s384
          %s386 = sshll.u32 %s383, 4
          %s387 = int_to_ptr.hbm [resolvable:$true] %s386
          %392 = dma.vmem_to_hbm [thread:$0]  %s385, 256, %s387, %s370, 128, 128, 8
        $region48: #{generator_forward_prepared.1} parent=31 // pred_fallthru
          _
      $region32: #{generator_forward_prepared.1} parent=5 // pred_fallthru
        _
      %p393 = scmp.le.s32.totalorder 2, %s12
      // Predicated region
      $region49: #{generator_forward_prepared.1} parent=5 // pred_check
        %p394 = pneg %p393
      $region50: #{generator_forward_prepared.1} parent=5 // pred_check_branch
        %396 = sbr.rel (%p394) target = $region52
      $region51: #{generator_forward_prepared.1} parent=5 // pred_region
        %s397 = ssub.s32 %s12, 2
        // Predicated region
        $region53: #{generator_forward_prepared.1} parent=51 // pred_check
          %p398 = pneg %p141
        $region54: #{generator_forward_prepared.1} parent=51 // pred_check_branch
          %400 = sbr.rel (%p398) target = $region56
        $region55: #{generator_forward_prepared.1} parent=51 // pred_region
          %s401 = sand.u32 %s126, 1
          %s402 = scalar_lea.sflag [#allocation6], %s401
          %s403 = sand.u32 %s126, 1
          %s404 = smul.addr %s403, 16
          %s405 = scalar_lea.vmem [#allocation5], %s404
          %407 = dma.done %s402, 256
        $region56: #{generator_forward_prepared.1} parent=51 // pred_fallthru
          _
      $region52: #{generator_forward_prepared.1} parent=5 // pred_fallthru
        _
    $region6: #{generator_forward_prepared.1} parent=1 // loop_footer
      %s16 = sadd.s32 1, %s12
    $region7: #{generator_forward_prepared.1} parent=1 // loop_footer_branch
      %11 = sbr.rel target = $region3
    $region8: #{generator_forward_prepared.1} parent=1 // loop_exit
      _
    %408 = vsyncpa [#allocation6], 1
    %s409 = scalar_lea.sflag [#allocation6], 1
    %410 = vsyncpa %s409, 1

</llo_original>
